<compile_context>
chip_gen: v7x
topology: tpu7x:2x2x1
jax: 0.10.0
libtpu: 0.0.40
codegen_flags: <defaults>
</compile_context>

<pallas_src>
import jax
import jax.numpy as jnp
from jax import lax
from jax.experimental import pallas as pl
from jax.experimental.pallas import tpu as pltpu

_LANE = 128
_MAX_TILE_ROWS = 1024  # (1024, 128) f32 = 512 KiB per buffer per input


def _make_kernel(numel, n_sub):
    """numel: true (unpadded) element count of the segmentation map.
    n_sub: tile_rows // 8 (number of (8,128) vregs per tile)."""

    def kernel(seg_ref, mask_ref, cls_ref, label_ref, x_ref, y_ref,
               out_ref, acc_pm, acc_p, acc_m):
        i = pl.program_id(0)

        @pl.when(i == 0)
        def _init():
            acc_pm[...] = jnp.zeros_like(acc_pm)
            acc_p[...] = jnp.zeros_like(acc_p)
            acc_m[...] = jnp.zeros_like(acc_m)

        # ---- dice partial sums for this tile (cast in-kernel, VPU-only) ----
        seg = seg_ref[...].astype(jnp.float32)        # (tile_rows, 128)
        m = mask_ref[...].astype(jnp.float32)         # (tile_rows, 128)
        p = jax.nn.sigmoid(seg)

        # Reduce the leading (vreg-count) axis only: plain vector adds, no XLU.
        acc_pm[...] += (p * m).reshape(n_sub, 8, _LANE).sum(axis=0)
        acc_p[...] += p.reshape(n_sub, 8, _LANE).sum(axis=0)
        acc_m[...] += m.reshape(n_sub, 8, _LANE).sum(axis=0)

        @pl.when(i == pl.num_programs(0) - 1)
        def _finalize():
            eps = 1e-7
            s_pm = jnp.sum(acc_pm[...])
            s_p = jnp.sum(acc_p[...])
            s_m = jnp.sum(acc_m[...])

            # probas = [p, 1-p]; one-hot(target) reordered = [m, 1-m]
            inter_fg = s_pm
            inter_bg = numel - s_p - s_m + s_pm       # sum((1-p)*(1-m))
            card_fg = s_p + s_m                       # sum(p + m)
            card_bg = 2.0 * numel - card_fg           # sum((1-p)+(1-m))
            dice = 0.5 * (2.0 * inter_fg / (card_fg + eps)
                          + 2.0 * inter_bg / (card_bg + eps))
            loss0 = 1.0 - dice

            # ---- cross entropy (preds[1] vs label), mean reduction ----
            logits = cls_ref[...].astype(jnp.float32)             # (N, C)
            lbl = label_ref[...]                                  # (N, 1) i32
            onehot = (lax.broadcasted_iota(jnp.int32, logits.shape, 1) == lbl)
            onehot = onehot.astype(jnp.float32)
            mx = jnp.max(logits, axis=1, keepdims=True)
            lse = mx + jnp.log(jnp.sum(jnp.exp(logits - mx), axis=1,
                                       keepdims=True))
            picked = jnp.sum(logits * onehot, axis=1, keepdims=True)
            loss1 = jnp.mean(lse - picked)

            # ---- BCE with logits (preds[2] vs intensity), mean reduction ----
            x = x_ref[...].astype(jnp.float32)                    # (N, 1)
            y = y_ref[...].astype(jnp.float32)                    # (N, 1)
            bce = (jnp.maximum(x, 0.0) - x * y
                   + jnp.log1p(jnp.exp(-jnp.abs(x))))
            loss2 = jnp.mean(bce)

            out_ref[0] = loss0
            out_ref[1] = loss1
            out_ref[2] = loss2

    return kernel


def multi_task_loss(seg_logits, mask, cls_logits, label, int_logits, intensity):
    """preds = (seg_logits (N,1,H,W), cls_logits (N,C), int_logits (N,1));
    mask (N,1,H,W) int, label (N,) int, intensity (N,) float. Returns (3,) f32."""
    N, C1, H, W = seg_logits.shape
    assert C1 == 1
    total = N * H * W

    # Lane-dense layout: flatten to (rows, 128), pad rows up to a multiple of
    # the tile height (and of 8 sublanes).
    rows = -(-total // _LANE)
    rows8 = -(-rows // 8) * 8
    tile_rows = min(_MAX_TILE_ROWS, rows8)
    padded_rows = -(-rows8 // tile_rows) * tile_rows
    num_tiles = padded_rows // tile_rows
    padded_total = padded_rows * _LANE

    seg_flat = seg_logits.reshape(total)          # keep original dtype
    mask_flat = mask.reshape(total)               # keep original (int) dtype
    pad = padded_total - total
    if pad:
        # seg pad -> hugely negative (sigmoid == 0), mask pad -> 0, so the
        # padded tail contributes nothing to s_pm / s_p / s_m.
        seg_flat = jnp.pad(seg_flat, (0, pad), constant_values=-1e30)
        mask_flat = jnp.pad(mask_flat, (0, pad), constant_values=0)
    seg2d = seg_flat.reshape(padded_rows, _LANE)
    mask2d = mask_flat.reshape(padded_rows, _LANE)

    cls = cls_logits
    num_classes = cls.shape[1]
    lbl = label.astype(jnp.int32).reshape(N, 1)
    x = int_logits.reshape(N, 1)
    y = intensity.astype(jnp.float32).reshape(N, 1)

    kernel = _make_kernel(float(total), tile_rows // 8)

    return pl.pallas_call(
        kernel,
        out_shape=jax.ShapeDtypeStruct((3,), jnp.float32),
        grid_spec=pltpu.PrefetchScalarGridSpec(
            num_scalar_prefetch=0,
            grid=(num_tiles,),
            in_specs=[
                pl.BlockSpec((tile_rows, _LANE), lambda i: (i, 0)),   # seg
                pl.BlockSpec((tile_rows, _LANE), lambda i: (i, 0)),   # mask
                pl.BlockSpec((N, num_classes), lambda i: (0, 0)),     # cls logits
                pl.BlockSpec((N, 1), lambda i: (0, 0)),               # label
                pl.BlockSpec((N, 1), lambda i: (0, 0)),               # int logits
                pl.BlockSpec((N, 1), lambda i: (0, 0)),               # intensity
            ],
            out_specs=pl.BlockSpec((3,), lambda i: (0,),
                                   memory_space=pltpu.MemorySpace.SMEM),
            scratch_shapes=[pltpu.VMEM((8, _LANE), jnp.float32)] * 3,
        ),
        compiler_params=pltpu.CompilerParams(
            dimension_semantics=("arbitrary",),
            vmem_limit_bytes=32 * 1024 * 1024,
        ),
    )(seg2d, mask2d, cls, lbl, x, y)


def _reference_loss(seg_logits, mask, cls_logits, label, int_logits, intensity):
    eps = 1e-7
    p = jax.nn.sigmoid(seg_logits.astype(jnp.float32))
    m = mask.astype(jnp.float32)
    probas = jnp.concatenate([p, 1.0 - p], axis=1)
    true_1h = jnp.concatenate([m, 1.0 - m], axis=1)
    inter = jnp.sum(probas * true_1h, axis=(0, 2, 3))
    card = jnp.sum(probas + true_1h, axis=(0, 2, 3))
    l0 = 1.0 - jnp.mean(2.0 * inter / (card + eps))

    lg = cls_logits.astype(jnp.float32)
    lse = jax.scipy.special.logsumexp(lg, axis=1)
    picked = jnp.take_along_axis(lg, label[:, None].astype(jnp.int32), axis=1)[:, 0]
    l1 = jnp.mean(lse - picked)

    x = int_logits.astype(jnp.float32)[:, 0]
    y = intensity.astype(jnp.float32)
    l2 = jnp.mean(jnp.maximum(x, 0.0) - x * y + jnp.log1p(jnp.exp(-jnp.abs(x))))
    return jnp.stack([l0, l1, l2])


if __name__ == "__main__":
    key = jax.random.PRNGKey(0)

    def run_case(key, N, H, W, NUM_CLASSES):
        k1, k2, k3, k4, k5, k6 = jax.random.split(key, 6)
        seg_logits = jax.random.normal(k1, (N, 1, H, W), dtype=jnp.float32)
        mask = jax.random.bernoulli(k2, 0.5, (N, 1, H, W)).astype(jnp.int32)
        cls_logits = jax.random.normal(k3, (N, NUM_CLASSES), dtype=jnp.float32)
        label = jax.random.randint(k4, (N,), 0, NUM_CLASSES, dtype=jnp.int32)
        int_logits = jax.random.normal(k5, (N, 1), dtype=jnp.float32)
        intensity = jax.random.bernoulli(k6, 0.5, (N,)).astype(jnp.float32)

        out = multi_task_loss(seg_logits, mask, cls_logits, label,
                              int_logits, intensity)
        out = jax.block_until_ready(out)
        ref = _reference_loss(seg_logits, mask, cls_logits, label,
                              int_logits, intensity)
        assert out.shape == (3,)
        assert jnp.allclose(out, ref, rtol=1e-5, atol=1e-5), (out, ref)

    ka, kb = jax.random.split(key)
    run_case(ka, N=2, H=16, W=16, NUM_CLASSES=4)   # tiny, exercises padding
    run_case(kb, N=3, H=20, W=20, NUM_CLASSES=5)   # non-multiple-of-128 total

    print("KERNEL_OK")
</pallas_src>

<mosaic_0001>
module attributes {stable_mosaic.version = 11 : i64} {
  func.func @kernel(%arg0: i32, %arg1: memref<8x128xf32, #tpu.memory_space<vmem>>, %arg2: memref<8x128xi32, #tpu.memory_space<vmem>>, %arg3: memref<2x4xf32, #tpu.memory_space<vmem>>, %arg4: memref<2x1xi32, #tpu.memory_space<vmem>>, %arg5: memref<2x1xf32, #tpu.memory_space<vmem>>, %arg6: memref<2x1xf32, #tpu.memory_space<vmem>>, %arg7: memref<3xf32, #tpu.memory_space<smem>>, %arg8: memref<8x128xf32, #tpu.memory_space<vmem>>, %arg9: memref<8x128xf32, #tpu.memory_space<vmem>>, %arg10: memref<8x128xf32, #tpu.memory_space<vmem>>) attributes {dimension_semantics = [#tpu.dimension_semantics<arbitrary>], iteration_bounds = array<i64: 1>, scalar_prefetch = 0 : i64, scratch_operands = 3 : i64, tpu.core_type = #tpu.core_type<tc>, window_params = [{transform_indices = @transform_0, window_bounds = array<i64: 8, 128>}, {transform_indices = @transform_1, window_bounds = array<i64: 8, 128>}, {pipeline_mode = #tpu.pipeline_mode<synchronous>, transform_indices = @transform_2, window_bounds = array<i64: 2, 4>}, {pipeline_mode = #tpu.pipeline_mode<synchronous>, transform_indices = @transform_3, window_bounds = array<i64: 2, 1>}, {pipeline_mode = #tpu.pipeline_mode<synchronous>, transform_indices = @transform_4, window_bounds = array<i64: 2, 1>}, {pipeline_mode = #tpu.pipeline_mode<synchronous>, transform_indices = @transform_5, window_bounds = array<i64: 2, 1>}, {transform_indices = @transform_6, window_bounds = array<i64: 3>}]} {
    %c0_i32 = arith.constant 0 : i32
    %0 = arith.cmpi eq, %arg0, %c0_i32 : i32
    %1 = arith.extui %0 : i1 to i32
    %c0_i32_0 = arith.constant 0 : i32
    %2 = arith.cmpi ne, %1, %c0_i32_0 : i32
    scf.if %2 {
      %cst_21 = arith.constant 0.000000e+00 : f32
      %30 = vector.broadcast %cst_21 : f32 to vector<8x128xf32>
      %c0_22 = arith.constant 0 : index
      %c0_23 = arith.constant 0 : index
      %31 = vector.load %arg8[%c0_22, %c0_23] : memref<8x128xf32, #tpu.memory_space<vmem>>, vector<8x128xf32>
      tpu.vector_store %arg8[%c0_22, %c0_23], %30 {strides = array<i32>} : memref<8x128xf32, #tpu.memory_space<vmem>>, vector<8x128xf32>,
      %cst_24 = arith.constant 0.000000e+00 : f32
      %32 = vector.broadcast %cst_24 : f32 to vector<8x128xf32>
      %c0_25 = arith.constant 0 : index
      %c0_26 = arith.constant 0 : index
      %33 = vector.load %arg9[%c0_25, %c0_26] : memref<8x128xf32, #tpu.memory_space<vmem>>, vector<8x128xf32>
      tpu.vector_store %arg9[%c0_25, %c0_26], %32 {strides = array<i32>} : memref<8x128xf32, #tpu.memory_space<vmem>>, vector<8x128xf32>,
      %cst_27 = arith.constant 0.000000e+00 : f32
      %34 = vector.broadcast %cst_27 : f32 to vector<8x128xf32>
      %c0_28 = arith.constant 0 : index
      %c0_29 = arith.constant 0 : index
      %35 = vector.load %arg10[%c0_28, %c0_29] : memref<8x128xf32, #tpu.memory_space<vmem>>, vector<8x128xf32>
      tpu.vector_store %arg10[%c0_28, %c0_29], %34 {strides = array<i32>} : memref<8x128xf32, #tpu.memory_space<vmem>>, vector<8x128xf32>,
    } else {
    }
    %c0 = arith.constant 0 : index
    %c0_1 = arith.constant 0 : index
    %3 = vector.load %arg1[%c0, %c0_1] : memref<8x128xf32, #tpu.memory_space<vmem>>, vector<8x128xf32>
    %c0_2 = arith.constant 0 : index
    %c0_3 = arith.constant 0 : index
    %4 = vector.load %arg2[%c0_2, %c0_3] : memref<8x128xi32, #tpu.memory_space<vmem>>, vector<8x128xi32>
    %5 = arith.sitofp %4 : vector<8x128xi32> to vector<8x128xf32>
    %6 = arith.negf %3 : vector<8x128xf32>
    %7 = math.exp %6 : vector<8x128xf32>
    %cst = arith.constant 1.000000e+00 : f32
    %8 = vector.broadcast %cst : f32 to vector<8x128xf32>
    %9 = arith.addf %8, %7 : vector<8x128xf32>
    %10 = arith.divf %8, %9 : vector<8x128xf32>
    %c0_4 = arith.constant 0 : index
    %c0_5 = arith.constant 0 : index
    %11 = vector.load %arg8[%c0_4, %c0_5] : memref<8x128xf32, #tpu.memory_space<vmem>>, vector<8x128xf32>
    %12 = arith.mulf %10, %5 : vector<8x128xf32>
    %13 = vector.shape_cast %12 : vector<8x128xf32> to vector<1x8x128xf32>
    %cst_6 = arith.constant dense<0.000000e+00> : vector<8x128xf32>
    %14 = vector.multi_reduction <add>, %13, %cst_6 [0] : vector<1x8x128xf32> to vector<8x128xf32>
    %15 = arith.addf %11, %14 : vector<8x128xf32>
    %c0_7 = arith.constant 0 : index
    %c0_8 = arith.constant 0 : index
    %16 = vector.load %arg8[%c0_7, %c0_8] : memref<8x128xf32, #tpu.memory_space<vmem>>, vector<8x128xf32>
    tpu.vector_store %arg8[%c0_7, %c0_8], %15 {strides = array<i32>} : memref<8x128xf32, #tpu.memory_space<vmem>>, vector<8x128xf32>,
    %c0_9 = arith.constant 0 : index
    %c0_10 = arith.constant 0 : index
    %17 = vector.load %arg9[%c0_9, %c0_10] : memref<8x128xf32, #tpu.memory_space<vmem>>, vector<8x128xf32>
    %18 = vector.shape_cast %10 : vector<8x128xf32> to vector<1x8x128xf32>
    %cst_11 = arith.constant dense<0.000000e+00> : vector<8x128xf32>
    %19 = vector.multi_reduction <add>, %18, %cst_11 [0] : vector<1x8x128xf32> to vector<8x128xf32>
    %20 = arith.addf %17, %19 : vector<8x128xf32>
    %c0_12 = arith.constant 0 : index
    %c0_13 = arith.constant 0 : index
    %21 = vector.load %arg9[%c0_12, %c0_13] : memref<8x128xf32, #tpu.memory_space<vmem>>, vector<8x128xf32>
    tpu.vector_store %arg9[%c0_12, %c0_13], %20 {strides = array<i32>} : memref<8x128xf32, #tpu.memory_space<vmem>>, vector<8x128xf32>,
    %c0_14 = arith.constant 0 : index
    %c0_15 = arith.constant 0 : index
    %22 = vector.load %arg10[%c0_14, %c0_15] : memref<8x128xf32, #tpu.memory_space<vmem>>, vector<8x128xf32>
    %23 = vector.shape_cast %5 : vector<8x128xf32> to vector<1x8x128xf32>
    %cst_16 = arith.constant dense<0.000000e+00> : vector<8x128xf32>
    %24 = vector.multi_reduction <add>, %23, %cst_16 [0] : vector<1x8x128xf32> to vector<8x128xf32>
    %25 = arith.addf %22, %24 : vector<8x128xf32>
    %c0_17 = arith.constant 0 : index
    %c0_18 = arith.constant 0 : index
    %26 = vector.load %arg10[%c0_17, %c0_18] : memref<8x128xf32, #tpu.memory_space<vmem>>, vector<8x128xf32>
    tpu.vector_store %arg10[%c0_17, %c0_18], %25 {strides = array<i32>} : memref<8x128xf32, #tpu.memory_space<vmem>>, vector<8x128xf32>,
    %c0_i32_19 = arith.constant 0 : i32
    %27 = arith.cmpi eq, %arg0, %c0_i32_19 : i32
    %28 = arith.extui %27 : i1 to i32
    %c0_i32_20 = arith.constant 0 : i32
    %29 = arith.cmpi ne, %28, %c0_i32_20 : i32
    scf.if %29 {
      %c0_21 = arith.constant 0 : index
      %c0_22 = arith.constant 0 : index
      %30 = vector.load %arg8[%c0_21, %c0_22] : memref<8x128xf32, #tpu.memory_space<vmem>>, vector<8x128xf32>
      %31 = vector.shape_cast %30 : vector<8x128xf32> to vector<1x8x128xf32>
      %cst_23 = arith.constant dense<0.000000e+00> : vector<1xf32>
      %32 = vector.multi_reduction <add>, %31, %cst_23 [1, 2] : vector<1x8x128xf32> to vector<1xf32>
      %33 = vector.shape_cast %32 : vector<1xf32> to vector<1x1x1xf32>
      %34 = vector.extract %33[0, 0, 0] : f32 from vector<1x1x1xf32>
      %c0_24 = arith.constant 0 : index
      %c0_25 = arith.constant 0 : index
      %35 = vector.load %arg9[%c0_24, %c0_25] : memref<8x128xf32, #tpu.memory_space<vmem>>, vector<8x128xf32>
      %36 = vector.shape_cast %35 : vector<8x128xf32> to vector<1x8x128xf32>
      %cst_26 = arith.constant dense<0.000000e+00> : vector<1xf32>
      %37 = vector.multi_reduction <add>, %36, %cst_26 [1, 2] : vector<1x8x128xf32> to vector<1xf32>
      %38 = vector.shape_cast %37 : vector<1xf32> to vector<1x1x1xf32>
      %39 = vector.extract %38[0, 0, 0] : f32 from vector<1x1x1xf32>
      %c0_27 = arith.constant 0 : index
      %c0_28 = arith.constant 0 : index
      %40 = vector.load %arg10[%c0_27, %c0_28] : memref<8x128xf32, #tpu.memory_space<vmem>>, vector<8x128xf32>
      %41 = vector.shape_cast %40 : vector<8x128xf32> to vector<1x8x128xf32>
      %cst_29 = arith.constant dense<0.000000e+00> : vector<1xf32>
      %42 = vector.multi_reduction <add>, %41, %cst_29 [1, 2] : vector<1x8x128xf32> to vector<1xf32>
      %43 = vector.shape_cast %42 : vector<1xf32> to vector<1x1x1xf32>
      %44 = vector.extract %43[0, 0, 0] : f32 from vector<1x1x1xf32>
      %cst_30 = arith.constant 5.120000e+02 : f32
      %45 = arith.subf %cst_30, %39 : f32
      %46 = arith.subf %45, %44 : f32
      %47 = arith.addf %46, %34 : f32
      %48 = arith.addf %39, %44 : f32
      %cst_31 = arith.constant 1.024000e+03 : f32
      %49 = arith.subf %cst_31, %48 : f32
      %cst_32 = arith.constant 2.000000e+00 : f32
      %50 = arith.mulf %cst_32, %34 : f32
      %cst_33 = arith.constant 1.000000e-07 : f32
      %51 = arith.addf %48, %cst_33 : f32
      %52 = arith.divf %50, %51 : f32
      %cst_34 = arith.constant 2.000000e+00 : f32
      %53 = arith.mulf %cst_34, %47 : f32
      %cst_35 = arith.constant 1.000000e-07 : f32
      %54 = arith.addf %49, %cst_35 : f32
      %55 = arith.divf %53, %54 : f32
      %56 = arith.addf %52, %55 : f32
      %cst_36 = arith.constant 5.000000e-01 : f32
      %57 = arith.mulf %cst_36, %56 : f32
      %cst_37 = arith.constant 1.000000e+00 : f32
      %58 = arith.subf %cst_37, %57 : f32
      %c0_38 = arith.constant 0 : index
      %c0_39 = arith.constant 0 : index
      %59 = vector.load %arg3[%c0_38, %c0_39] : memref<2x4xf32, #tpu.memory_space<vmem>>, vector<2x4xf32>
      %c0_40 = arith.constant 0 : index
      %c0_41 = arith.constant 0 : index
      %60 = vector.load %arg4[%c0_40, %c0_41] : memref<2x1xi32, #tpu.memory_space<vmem>>, vector<2x1xi32>
      %61 = tpu.iota {dimensions = array<i32: 1>} : vector<2x4xi32>
      %62 = vector.broadcast %60 : vector<2x1xi32> to vector<2x4xi32>
      %63 = arith.cmpi eq, %61, %62 : vector<2x4xi32>
      %64 = arith.extui %63 : vector<2x4xi1> to vector<2x4xi32>
      %65 = arith.sitofp %64 : vector<2x4xi32> to vector<2x4xf32>
      %cst_42 = arith.constant dense<0xFF800000> : vector<2xf32>
      %66 = vector.multi_reduction <maximumf>, %59, %cst_42 [1] : vector<2x4xf32> to vector<2xf32>
      %67 = vector.shape_cast %66 : vector<2xf32> to vector<2x1xf32>
      %68 = vector.broadcast %67 : vector<2x1xf32> to vector<2x4xf32>
      %69 = arith.subf %59, %68 : vector<2x4xf32>
      %70 = math.exp %69 : vector<2x4xf32>
      %cst_43 = arith.constant dense<0.000000e+00> : vector<2xf32>
      %71 = vector.multi_reduction <add>, %70, %cst_43 [1] : vector<2x4xf32> to vector<2xf32>
      %72 = vector.shape_cast %71 : vector<2xf32> to vector<2x1xf32>
      %73 = math.log %72 : vector<2x1xf32>
      %74 = arith.addf %67, %73 : vector<2x1xf32>
      %75 = arith.mulf %59, %65 : vector<2x4xf32>
      %cst_44 = arith.constant dense<0.000000e+00> : vector<2xf32>
      %76 = vector.multi_reduction <add>, %75, %cst_44 [1] : vector<2x4xf32> to vector<2xf32>
      %77 = vector.shape_cast %76 : vector<2xf32> to vector<2x1xf32>
      %78 = arith.subf %74, %77 : vector<2x1xf32>
      %79 = vector.shape_cast %78 : vector<2x1xf32> to vector<1x2x1xf32>
      %cst_45 = arith.constant dense<0.000000e+00> : vector<1xf32>
      %80 = vector.multi_reduction <add>, %79, %cst_45 [1, 2] : vector<1x2x1xf32> to vector<1xf32>
      %81 = vector.shape_cast %80 : vector<1xf32> to vector<1x1x1xf32>
      %82 = vector.extract %81[0, 0, 0] : f32 from vector<1x1x1xf32>
      %cst_46 = arith.constant 2.000000e+00 : f32
      %83 = arith.divf %82, %cst_46 : f32
      %c0_47 = arith.constant 0 : index
      %c0_48 = arith.constant 0 : index
      %84 = vector.load %arg5[%c0_47, %c0_48] : memref<2x1xf32, #tpu.memory_space<vmem>>, vector<2x1xf32>
      %c0_49 = arith.constant 0 : index
      %c0_50 = arith.constant 0 : index
      %85 = vector.load %arg6[%c0_49, %c0_50] : memref<2x1xf32, #tpu.memory_space<vmem>>, vector<2x1xf32>
      %cst_51 = arith.constant 0.000000e+00 : f32
      %86 = vector.broadcast %cst_51 : f32 to vector<2x1xf32>
      %87 = arith.maximumf %84, %86 : vector<2x1xf32>
      %88 = arith.mulf %84, %85 : vector<2x1xf32>
      %89 = arith.subf %87, %88 : vector<2x1xf32>
      %90 = math.absf %84 : vector<2x1xf32>
      %cst_52 = arith.constant 0.000000e+00 : f32
      %91 = vector.broadcast %cst_52 : f32 to vector<2x1xf32>
      %92 = arith.subf %91, %90 : vector<2x1xf32>
      %93 = math.exp %92 : vector<2x1xf32>
      %94 = math.log1p %93 : vector<2x1xf32>
      %95 = arith.addf %89, %94 : vector<2x1xf32>
      %96 = vector.shape_cast %95 : vector<2x1xf32> to vector<1x2x1xf32>
      %cst_53 = arith.constant dense<0.000000e+00> : vector<1xf32>
      %97 = vector.multi_reduction <add>, %96, %cst_53 [1, 2] : vector<1x2x1xf32> to vector<1xf32>
      %98 = vector.shape_cast %97 : vector<1xf32> to vector<1x1x1xf32>
      %99 = vector.extract %98[0, 0, 0] : f32 from vector<1x1x1xf32>
      %cst_54 = arith.constant 2.000000e+00 : f32
      %100 = arith.divf %99, %cst_54 : f32
      %c0_55 = arith.constant 0 : index
      %101 = memref.load %arg7[%c0_55] : memref<3xf32, #tpu.memory_space<smem>>
      memref.store %58, %arg7[%c0_55] : memref<3xf32, #tpu.memory_space<smem>>
      %c1 = arith.constant 1 : index
      %102 = memref.load %arg7[%c1] : memref<3xf32, #tpu.memory_space<smem>>
      memref.store %83, %arg7[%c1] : memref<3xf32, #tpu.memory_space<smem>>
      %c2 = arith.constant 2 : index
      %103 = memref.load %arg7[%c2] : memref<3xf32, #tpu.memory_space<smem>>
      memref.store %100, %arg7[%c2] : memref<3xf32, #tpu.memory_space<smem>>
    } else {
    }
    return
  }
  func.func @transform_0(%arg0: i32) -> (i32, i32) {
    %c0_i32 = arith.constant 0 : i32
    %c0_i32_0 = arith.constant 0 : i32
    return %arg0, %c0_i32 : i32, i32
  }
  func.func @transform_1(%arg0: i32) -> (i32, i32) {
    %c0_i32 = arith.constant 0 : i32
    %c0_i32_0 = arith.constant 0 : i32
    return %arg0, %c0_i32 : i32, i32
  }
  func.func @transform_2(%arg0: i32) -> (i32, i32) {
    %c0_i32 = arith.constant 0 : i32
    %c0_i32_0 = arith.constant 0 : i32
    %c0_i32_1 = arith.constant 0 : i32
    return %c0_i32, %c0_i32_0 : i32, i32
  }
  func.func @transform_3(%arg0: i32) -> (i32, i32) {
    %c0_i32 = arith.constant 0 : i32
    %c0_i32_0 = arith.constant 0 : i32
    %c0_i32_1 = arith.constant 0 : i32
    return %c0_i32, %c0_i32_0 : i32, i32
  }
  func.func @transform_4(%arg0: i32) -> (i32, i32) {
    %c0_i32 = arith.constant 0 : i32
    %c0_i32_0 = arith.constant 0 : i32
    %c0_i32_1 = arith.constant 0 : i32
    return %c0_i32, %c0_i32_0 : i32, i32
  }
  func.func @transform_5(%arg0: i32) -> (i32, i32) {
    %c0_i32 = arith.constant 0 : i32
    %c0_i32_0 = arith.constant 0 : i32
    %c0_i32_1 = arith.constant 0 : i32
    return %c0_i32, %c0_i32_0 : i32, i32
  }
  func.func @transform_6(%arg0: i32) -> i32 {
    %c0_i32 = arith.constant 0 : i32
    %c0_i32_0 = arith.constant 0 : i32
    return %c0_i32 : i32
  }
}

</mosaic_0001>

<llo_original>
// kernel: tpu_custom_call.1
$region0: #{tpu_custom_call.1}
  #allocation0 [shape = 'u32[]', space=smem, size = 0x4, offset = 0x4, fixed_abs, tag = 'smem constant byte address 0x4 - core index']
  #allocation1 [shape = 'u32[144,128]{1,0:T(1,128)}', space=vmem, size = 0x12000, scoped, tag = 'internal scratch']
  #allocation2 [shape = 'f32[8,128]{1,0:T(8,128)}', space=vmem, size = 0x1000, scoped, tag = 'scratch operand']
  #allocation3 [shape = 'f32[8,128]{1,0:T(8,128)}', space=vmem, size = 0x1000, scoped, tag = 'scratch operand']
  #allocation4 [shape = 'f32[8,128]{1,0:T(8,128)}', space=vmem, size = 0x1000, scoped, tag = 'scratch operand']
  %s0 = inlined_call_operand.vmem [shape: f32[8,128], index: 0, kind: input, shape index: {}]
  %s1 = inlined_call_operand.hbm [shape: s32[8,128], index: 1, kind: input, shape index: {}]
  %s2 = inlined_call_operand.vmem [shape: f32[2,4], index: 2, kind: input, shape index: {}]
  %s3 = inlined_call_operand.vmem [shape: s32[2,1], index: 3, kind: input, shape index: {}]
  %s4 = inlined_call_operand.vmem [shape: f32[2,1], index: 4, kind: input, shape index: {}]
  %s5 = inlined_call_operand.vmem [shape: f32[2,1], index: 5, kind: input, shape index: {}]
  %s6 = inlined_call_operand.hbm [shape: f32[3], index: 6, kind: output, shape index: {}]
  %s7 = sld [smem:[#allocation0]]
  $region46: #{tpu_custom_call.1} parent=0
    _
  %s9 = ssub.s32 1, %s7
  %s10 = scalar_select 0, %s9, %s7
  $region1: #{tpu_custom_call.1} parent=0
    #allocation5 [shape = 'u8[4096]{0}', space=vmem, size = 0x1000, scoped, tag = 'input window, operand 1, single buffered']
    #allocation6 [shape = 's32[1]{0}', space=sflag, size = 0x4, scoped, tag = 'scoped memory for tpu_custom_call.1']
    #allocation7 [shape = 's32[1]{0}', space=sflag, size = 0x4, scoped, tag = 'scoped memory for tpu_custom_call.1']
    #allocation8 [shape = 'u8[512]{0}', space=smem, size = 0x200, scoped, tag = 'output window, operand 0, single buffered']
    %11 = vsyncpa [#allocation6], 0
    %12 = vsyncpa [#allocation7], 0
    // Predicated region
    $region2: #{tpu_custom_call.1} parent=1 // pred_check
      _
    $region3: #{tpu_custom_call.1} parent=1 // pred_check_branch
      %14 = sbr.rel (0) target = $region5
    $region4: #{tpu_custom_call.1} parent=1 // pred_region
      _
    $region5: #{tpu_custom_call.1} parent=1 // pred_fallthru
      _
    // Predicated region
    $region6: #{tpu_custom_call.1} parent=1 // pred_check
      _
    $region7: #{tpu_custom_call.1} parent=1 // pred_check_branch
      %16 = sbr.rel (0) target = $region9
    $region8: #{tpu_custom_call.1} parent=1 // pred_region
      %s18 = ssub.s32 128, 128
      %19 = vsyncadd [#allocation6], %s18
      %s21 = sshll.u32 [#allocation5], 4
      %s22 = int_to_ptr.vmem [resolvable:$true] %s21
      %24 = dma.hbm_to_vmem [thread:$0]  %s1, 128, %s22, [#allocation6]
    $region9: #{tpu_custom_call.1} parent=1 // pred_fallthru
      _
    // Predicated region
    $region10: #{tpu_custom_call.1} parent=1 // pred_check
      _
    $region11: #{tpu_custom_call.1} parent=1 // pred_check_branch
      %26 = sbr.rel (0) target = $region13
    $region12: #{tpu_custom_call.1} parent=1 // pred_region
      _
    $region13: #{tpu_custom_call.1} parent=1 // pred_fallthru
      _
    // Predicated region
    $region14: #{tpu_custom_call.1} parent=1 // pred_check
      _
    $region15: #{tpu_custom_call.1} parent=1 // pred_check_branch
      %28 = sbr.rel (0) target = $region17
    $region16: #{tpu_custom_call.1} parent=1 // pred_region
      _
    $region17: #{tpu_custom_call.1} parent=1 // pred_fallthru
      _
    // Predicated region
    $region18: #{tpu_custom_call.1} parent=1 // pred_check
      _
    $region19: #{tpu_custom_call.1} parent=1 // pred_check_branch
      %30 = sbr.rel (0) target = $region21
    $region20: #{tpu_custom_call.1} parent=1 // pred_region
      _
    $region21: #{tpu_custom_call.1} parent=1 // pred_fallthru
      _
    // Predicated region
    $region22: #{tpu_custom_call.1} parent=1 // pred_check
      _
    $region23: #{tpu_custom_call.1} parent=1 // pred_check_branch
      %32 = sbr.rel (0) target = $region25
    $region24: #{tpu_custom_call.1} parent=1 // pred_region
      _
    $region25: #{tpu_custom_call.1} parent=1 // pred_fallthru
      _
    // Predicated region
    $region26: #{tpu_custom_call.1} parent=1 // pred_check
      _
    $region27: #{tpu_custom_call.1} parent=1 // pred_check_branch
      %34 = sbr.rel (0) target = $region29
    $region28: #{tpu_custom_call.1} parent=1 // pred_region
      %35 = dma.done [#allocation6], 128
    $region29: #{tpu_custom_call.1} parent=1 // pred_fallthru
      _
    %p36 = scmp.eq.s32.totalorder 0, 0
    // Predicated region
    $region30: #{tpu_custom_call.1} parent=1 // pred_check
      %p37 = pneg %p36
    $region31: #{tpu_custom_call.1} parent=1 // pred_check_branch
      %39 = sbr.rel (%p37) target = $region33
    $region32: #{tpu_custom_call.1} parent=1 // pred_region
      %40 = vst [vmem:[#allocation2] sm:$0xff] 0.0
      %41 = vst [vmem:[#allocation3] sm:$0xff] 0.0
      %42 = vst [vmem:[#allocation4] sm:$0xff] 0.0
    $region33: #{tpu_custom_call.1} parent=1 // pred_fallthru
      _
    %v43 = vld [vmem:[%s0] sm:$0xff]
    %v44 = vld [vmem:[#allocation5] sm:$0xff]
    %v45 = vcvt.s32.f32 %v44
    %v46 = vxor.u32 %v43, 2147483648
    %v47 = vmul.f32 %v46, 1.442695
    %v48 = vpow.pop %v47
    %v49 = vadd.f32 %v48, 1.0
    %v50 = vrcp.pop %v49
    %v51 = vmul.f32 1.0, %v50
    %v52 = vld [vmem:[#allocation2] sm:$0xff]
    %v53 = vmul.f32 %v51, %v45
    %v54 = vadd.f32 %v53, 0.0
    %v55 = vadd.f32 %v52, %v54
    %56 = vst [vmem:[#allocation2] sm:$0xff] %v55
    %v57 = vld [vmem:[#allocation3] sm:$0xff]
    %v58 = vadd.f32 %v51, 0.0
    %v59 = vadd.f32 %v57, %v58
    %60 = vst [vmem:[#allocation3] sm:$0xff] %v59
    %v61 = vld [vmem:[#allocation4] sm:$0xff]
    %v62 = vadd.f32 %v45, 0.0
    %v63 = vadd.f32 %v61, %v62
    %64 = vst [vmem:[#allocation4] sm:$0xff] %v63
    // Predicated region
    $region34: #{tpu_custom_call.1} parent=1 // pred_check
      %p65 = pneg %p36
    $region35: #{tpu_custom_call.1} parent=1 // pred_check_branch
      %67 = sbr.rel (%p65) target = $region37
    $region36: #{tpu_custom_call.1} parent=1 // pred_region
      %v68 = vld [vmem:[#allocation2] sm:$0xff]
      %69 = vadd.xlane.f32.xlu0 %v68
      %v70 = vpop.xlane.xlu0 %69
      %v71 = vrot.slane %v70, 4
      %v72 = vadd.f32 %v70, %v71
      %v73 = vrot.slane %v72, 2
      %v74 = vadd.f32 %v72, %v73
      %v75 = vrot.slane %v74, 1
      %v76 = vadd.f32 %v74, %v75
      %s77 = vtos %v76
      %v78 = vld [vmem:[#allocation3] sm:$0xff]
      %79 = vadd.xlane.f32.xlu0 %v78
      %v80 = vpop.xlane.xlu0 %79
      %v81 = vrot.slane %v80, 4
      %v82 = vadd.f32 %v80, %v81
      %v83 = vrot.slane %v82, 2
      %v84 = vadd.f32 %v82, %v83
      %v85 = vrot.slane %v84, 1
      %v86 = vadd.f32 %v84, %v85
      %s87 = vtos %v86
      %v88 = vld [vmem:[#allocation4] sm:$0xff]
      %89 = vadd.xlane.f32.xlu0 %v88
      %v90 = vpop.xlane.xlu0 %89
      %v91 = vrot.slane %v90, 4
      %v92 = vadd.f32 %v90, %v91
      %v93 = vrot.slane %v92, 2
      %v94 = vadd.f32 %v92, %v93
      %v95 = vrot.slane %v94, 1
      %v96 = vadd.f32 %v94, %v95
      %s97 = vtos %v96
      %s98 = ssub.f32 512.0, %s87
      %s99 = ssub.f32 %s98, %s97
      %s100 = sadd.f32 %s99, %s77
      %s101 = sadd.f32 %s87, %s97
      %s102 = ssub.f32 1024.0, %s101
      %s103 = smul.f32 %s77, 2.0
      %s104 = sadd.f32 %s101, 1e-07
      %v105 = vstv %s104
      %v106 = vrcp.pop %v105
      %s107 = vtos %v106
      %s108 = smul.f32 %s103, %s107
      %s109 = smul.f32 %s100, 2.0
      %s110 = sadd.f32 %s102, 1e-07
      %v111 = vstv %s110
      %v112 = vrcp.pop %v111
      %s113 = vtos %v112
      %s114 = smul.f32 %s109, %s113
      %s115 = sadd.f32 %s108, %s114
      %s116 = smul.f32 %s115, 0.5
      %s117 = ssub.f32 1.0, %s116
      %v118 = vld [vmem:[%s2] sm:$0x3]
      %v119 = vld [vmem:[%s3] sm:$0x3]
      %v120 = vlaneseq
      %v121 = vand.u32 %v120, 127
      %122 = vset.pattern.permute.xlu0 0
      %123 = vperm.xlu0 %122, %v119
      %v124 = vpop.permute.xlu0 %123
      %vm125 = vcmp.eq.s32.totalorder %v121, %v124
      %v126 = vsel %vm125, 1, 0
      %v127 = vcvt.s32.f32 %v126
      %vm128 = vcmask 25600
      %v129 = vsel %vm128, %v118, -inf
      %130 = vmax.xlane.f32.xlu0 %v129
      %v131 = vpop.xlane.xlu0 %130
      %v132 = vsub.f32 %v118, %v131
      %v133 = vmul.f32 %v132, 1.442695
      %v134 = vpow.pop %v133
      %v135 = vsel %vm128, %v134, 0.0
      %136 = vadd.xlane.f32.xlu0 %v135
      %v137 = vpop.xlane.xlu0 %136
      %v138 = vlog2.pop %v137
      %v139 = vmul.f32 %v138, 0.6931472
      %v140 = vadd.f32 %v131, %v139
      %v141 = vmul.f32 %v118, %v127
      %v142 = vsel %vm128, %v141, 0.0
      %143 = vadd.xlane.f32.xlu0 %v142
      %v144 = vpop.xlane.xlu0 %143
      %v145 = vsub.f32 %v140, %v144
      %vm146 = vcmask 1024
      %v147 = vsel %vm146, %v145, 0.0
      %148 = vadd.xlane.f32.xlu0 %v147
      %v149 = vpop.xlane.xlu0 %148
      %v150 = vrot.slane %v149, 4
      %v151 = vadd.f32 %v149, %v150
      %v152 = vrot.slane %v151, 2
      %v153 = vadd.f32 %v151, %v152
      %v154 = vrot.slane %v153, 1
      %v155 = vadd.f32 %v153, %v154
      %s156 = vtos %v155
      %v157 = vrcp.pop 2.0
      %s158 = vtos %v157
      %s159 = smul.f32 %s156, %s158
      %v160 = vld [vmem:[%s4] sm:$0x3]
      %v161 = vld [vmem:[%s5] sm:$0x3]
      %v162 = vmax.f32 %v160, 0.0
      %v163 = vmul.f32 %v160, %v161
      %v164 = vsub.f32 %v162, %v163
      %v165 = vand.u32 2147483647, %v160
      %v166 = vsub.f32 0.0, %v165
      %v167 = vmul.f32 %v166, 1.442695
      %v168 = vpow.pop %v167
      %v169 = vadd.f32 %v168, 1.0
      %v170 = vlog2.pop %v169
      %v171 = vmul.f32 %v170, 0.6931472
      %v172 = vmul.f32 -0.5, %v168
      %v173 = vadd.f32 %v172, 1.0
      %v174 = vmul.f32 %v173, %v168
      %v175 = vand.u32 2147483647, %v168
      %vm176 = vcmp.lt.f32.partialorder %v175, 0.0004427343
      %v177 = vsel %vm176, %v174, %v171
      %v178 = vadd.f32 %v164, %v177
      %v179 = vsel %vm146, %v178, 0.0
      %180 = vadd.xlane.f32.xlu0 %v179
      %v181 = vpop.xlane.xlu0 %180
      %v182 = vrot.slane %v181, 4
      %v183 = vadd.f32 %v181, %v182
      %v184 = vrot.slane %v183, 2
      %v185 = vadd.f32 %v183, %v184
      %v186 = vrot.slane %v185, 1
      %v187 = vadd.f32 %v185, %v186
      %s188 = vtos %v187
      %v189 = vrcp.pop 2.0
      %s190 = vtos %v189
      %s191 = smul.f32 %s188, %s190
      %s192 = scalar_lea.smem [#allocation8], 0
      %193 = sst [smem:[%s192]] %s117
      %s194 = scalar_lea.smem [#allocation8], 1
      %195 = sst [smem:[%s194]] %s159
      %s196 = scalar_lea.smem [#allocation8], 2
      %197 = sst [smem:[%s196]] %s191
    $region37: #{tpu_custom_call.1} parent=1 // pred_fallthru
      _
    // Predicated region
    $region38: #{tpu_custom_call.1} parent=1 // pred_check
      _
    $region39: #{tpu_custom_call.1} parent=1 // pred_check_branch
      %199 = sbr.rel (0) target = $region41
    $region40: #{tpu_custom_call.1} parent=1 // pred_region
      %s201 = ssub.s32 16, 16
      %202 = vsyncadd [#allocation7], %s201
      %205 = dma.smem_to_hbm [#allocation8], 16, %s6, [#allocation7]
    $region41: #{tpu_custom_call.1} parent=1 // pred_fallthru
      _
    // Predicated region
    $region42: #{tpu_custom_call.1} parent=1 // pred_check
      _
    $region43: #{tpu_custom_call.1} parent=1 // pred_check_branch
      %207 = sbr.rel (0) target = $region45
    $region44: #{tpu_custom_call.1} parent=1 // pred_region
      %208 = dma.done [#allocation7], 16
    $region45: #{tpu_custom_call.1} parent=1 // pred_fallthru
      _
    %209 = sfence
    %210 = vsyncpa [#allocation6], 1
    %211 = vsyncpa [#allocation7], 1

</llo_original>
